<compile_context>
chip_gen: v6e
topology: v6e:2x2x1
jax: 0.10.0
libtpu: 0.0.40
codegen_flags: <defaults>
</compile_context>

<pallas_src>
import functools

import jax
import jax.numpy as jnp
from jax import lax
from jax.experimental import pallas as pl
from jax.experimental.pallas import tpu as pltpu


def _eup_supports_bf16():
    """bf16 EUP (tanh) exists on v6e / v7x; keep f32 tanh elsewhere."""
    try:
        kind = jax.devices()[0].device_kind.lower()
    except Exception:  # pragma: no cover - defensive
        return False
    return ("v6" in kind) or ("v7" in kind)


def _rnn_kernel(xproj_f_ref, xproj_b_ref, whh_ref, w1t_ref, w1b_ref,
                b1_ref, w2_ref, b2_ref, out_ref, h_ref,
                *, n_streams, unroll, bf16_tanh):
    """One (batch-tile, time-chunk) grid step.

    xproj_f_ref : (t_chunk, bt, H) bf16  precomputed x_t @ W_ih + b_ih + b_hh
    xproj_b_ref : (bt, H)          f32   precomputed x_{T-1} @ W_ih_rev + b_rev
    whh_ref     : (H, H)           bf16  recurrent weights (forward dir)
    w1t/w1b_ref : (H, 64)          bf16  fc1 weight split (fwd / bwd halves)
    b1_ref      : (1, 64)          f32
    w2_ref      : (1, 64)          f32   fc2 weight row (transposed)
    b2_ref      : (1, 1)           f32
    out_ref     : (bt, 1)          f32   sigmoid probabilities
    h_ref       : (bt, H)          bf16  carried hidden state (VMEM scratch)
    """
    t_idx = pl.program_id(1)

    @pl.when(t_idx == 0)
    def _():
        h_ref[...] = jnp.zeros_like(h_ref)

    # Hoist the loop-invariant weight load out of the serial recurrence.
    whh = whh_ref[...]                                   # (H, H) bf16
    t_chunk = xproj_f_ref.shape[0]
    bt = h_ref.shape[0]
    half = bt // 2

    def cell(h_bf16, x_bf16):
        pre = jnp.dot(h_bf16, whh, preferred_element_type=jnp.float32)
        z = pre + x_bf16.astype(jnp.float32)
        if bf16_tanh:
            # v6e/v7x: bf16 EUP tanh halves EUP cycles on the serial path;
            # output is consumed in bf16 anyway.
            return jnp.tanh(z.astype(jnp.bfloat16))
        return jnp.tanh(z).astype(jnp.bfloat16)

    if n_streams == 2:
        # Two independent half-tiles per step: one stream's MXU pushes
        # overlap the other's tanh/add, hiding MXU fill/drain + EUP latency.
        def step(t, carry):
            h_a, h_b = carry
            x_a = xproj_f_ref[t, pl.ds(0, half), :]
            x_b = xproj_f_ref[t, pl.ds(half, half), :]
            return cell(h_a, x_a), cell(h_b, x_b)

        h_a, h_b = lax.fori_loop(
            0, t_chunk, step,
            (h_ref[pl.ds(0, half), :], h_ref[pl.ds(half, half), :]),
            unroll=unroll)
        h_ref[pl.ds(0, half), :] = h_a
        h_ref[pl.ds(half, half), :] = h_b
    else:
        def step(t, h):
            return cell(h, xproj_f_ref[t])

        h_ref[...] = lax.fori_loop(0, t_chunk, step, h_ref[...],
                                   unroll=unroll)

    @pl.when(t_idx == pl.num_programs(1) - 1)
    def _():
        h_fwd = h_ref[...]                               # (bt, H) bf16
        # output[:, -1, H:] of a bidirectional nn.RNN is the backward cell's
        # state after its *first* step (token T-1, h0 = 0): tanh(x W + b).
        h_bwd = jnp.tanh(xproj_b_ref[...])               # (bt, H) f32
        # TODO(synk): training-mode dropout (p=0.3) not implemented; it is
        # the identity at inference time.
        # fc1 without the lane-axis concat: two half-dots into one f32 acc.
        h1 = (jnp.dot(h_fwd, w1t_ref[...],
                      preferred_element_type=jnp.float32)
              + jnp.dot(h_bwd.astype(jnp.bfloat16), w1b_ref[...],
                        preferred_element_type=jnp.float32)
              + b1_ref[...])
        h1 = jnp.maximum(h1, 0.0)                        # (bt, 64)
        # fc2 (64 -> 1): VPU multiply + lane reduction (no N=1 MXU matmul).
        logit = jnp.sum(h1 * w2_ref[...], axis=-1, keepdims=True) + b2_ref[...]
        out_ref[...] = jax.nn.sigmoid(logit)


def _pick_b_tile(batch):
    cands = (256, 128, 64, 32, 16, 8)
    # Prefer the largest tile that still gives >= 2 batch tiles, so the
    # "parallel" batch axis can shard across v7x's two TensorCores and the
    # per-tile carry stays small.
    for cand in cands:
        if batch % cand == 0 and batch // cand >= 2:
            return cand
    for cand in cands:
        if batch % cand == 0:
            return cand
    return batch              # tiny batch: single full-extent tile


def _pick_t_chunk(seq_len, max_chunk=64):
    for cand in range(min(seq_len, max_chunk), 0, -1):
        if seq_len % cand == 0:
            return cand
    return 1


def _precompute_inputs(x_tokens, params):
    """Fold x_t @ W_ih + bias into per-token projections.

    Removes the E-dim matmul from the serial recurrence; only the H x H
    recurrent matmul remains on the critical path.  Returns
    (xproj_f (T, B, H) bf16, xproj_b_last (B, H) f32).
    """
    emb = params["embedding"]                                # (V, E)
    tok_tb = x_tokens.T                                      # (T, B), cheap
    vocab = emb.shape[0]
    batch, seq_len = x_tokens.shape
    if vocab <= 4 * batch * seq_len:
        # Small (or cacheable) vocab: fold projection + bias into a bf16
        # (V, H) table; per-token work becomes a pure bf16 gather, so the
        # dominant (T, B, H) tensor is written/read once in bf16.
        table_f = (emb @ params["wih_f"] + params["b_f"]).astype(jnp.bfloat16)
        table_b = emb @ params["wih_b"] + params["b_b"]      # (V, H) f32
        xproj_f = jnp.take(table_f, tok_tb, axis=0)          # (T, B, H) bf16
        xproj_b = jnp.take(table_b, x_tokens[:, -1], axis=0)  # (B, H) f32
    else:
        # Large vocab: gather embeddings, then one big MXU-friendly matmul
        # (instead of T tiny ones inside the recurrence).
        emb_seq = jnp.take(emb, tok_tb, axis=0).astype(jnp.bfloat16)  # (T,B,E)
        xproj_f = (jnp.einsum("tbe,eh->tbh", emb_seq,
                              params["wih_f"].astype(jnp.bfloat16),
                              preferred_element_type=jnp.float32)
                   + params["b_f"]).astype(jnp.bfloat16)
        xproj_b = (emb_seq[-1].astype(jnp.float32) @ params["wih_b"]
                   + params["b_b"])
    return xproj_f, xproj_b.astype(jnp.float32)


def rnn_model_forward(x_tokens, params):
    batch, seq_len = x_tokens.shape
    hidden = params["whh_f"].shape[0]

    # Pad batch to a multiple of 8 so sublane layouts are never masked/padded
    # inside the kernel (padding rows are independent and sliced off below).
    batch_p = max(8, ((batch + 7) // 8) * 8)
    if batch_p != batch:
        pad = jnp.zeros((batch_p - batch, seq_len), x_tokens.dtype)
        x_pad = jnp.concatenate([x_tokens, pad], axis=0)
    else:
        x_pad = x_tokens

    xproj_f, xproj_b = _precompute_inputs(x_pad, params)    # bf16, f32

    whh = params["whh_f"].astype(jnp.bfloat16)
    w1_top = params["w1"][:hidden].astype(jnp.bfloat16)
    w1_bot = params["w1"][hidden:].astype(jnp.bfloat16)
    b1 = params["b1"].astype(jnp.float32)
    w2_row = params["w2"].T.astype(jnp.float32)              # (1, 64)
    b2 = params["b2"].astype(jnp.float32)

    bt = _pick_b_tile(batch_p)
    tc = _pick_t_chunk(seq_len)
    n_streams = 2 if bt % 32 == 0 else 1        # half-tiles stay bf16-aligned
    unroll = max(1, min(8, tc))
    grid = (batch_p // bt, seq_len // tc)

    kernel = functools.partial(_rnn_kernel, n_streams=n_streams,
                               unroll=unroll,
                               bf16_tanh=_eup_supports_bf16())

    out = pl.pallas_call(
        kernel,
        out_shape=jax.ShapeDtypeStruct((batch_p, 1), jnp.float32),
        grid_spec=pltpu.PrefetchScalarGridSpec(
            num_scalar_prefetch=0,
            grid=grid,
            in_specs=[
                pl.BlockSpec((tc, bt, hidden), lambda b, t: (t, b, 0)),  # xproj_f
                pl.BlockSpec((bt, hidden), lambda b, t: (b, 0)),         # xproj_b
                pl.BlockSpec((hidden, hidden), lambda b, t: (0, 0)),     # whh
                pl.BlockSpec((hidden, 64), lambda b, t: (0, 0)),         # w1_top
                pl.BlockSpec((hidden, 64), lambda b, t: (0, 0)),         # w1_bot
                pl.BlockSpec((1, 64), lambda b, t: (0, 0)),              # b1
                pl.BlockSpec((1, 64), lambda b, t: (0, 0)),              # w2 row
                pl.BlockSpec((1, 1), lambda b, t: (0, 0)),               # b2
            ],
            out_specs=pl.BlockSpec((bt, 1), lambda b, t: (b, 0)),
            scratch_shapes=[pltpu.VMEM((bt, hidden), jnp.bfloat16)],
        ),
        compiler_params=pltpu.CompilerParams(
            dimension_semantics=("parallel", "arbitrary"),
            vmem_limit_bytes=32 * 1024 * 1024),
    )(xproj_f, xproj_b, whh, w1_top, w1_bot, b1, w2_row, b2)

    return out[:batch]


def init_params(key, vocab_size, embedding_dim=100, hidden_dim=128):
    ks = jax.random.split(key, 12)

    def u(k, shape, bound):
        return jax.random.uniform(k, shape, jnp.float32, -bound, bound)

    k_rnn = 1.0 / float(hidden_dim) ** 0.5
    k_fc1 = 1.0 / float(2 * hidden_dim) ** 0.5
    k_fc2 = 1.0 / float(64) ** 0.5
    return {
        "embedding": jax.random.normal(ks[0], (vocab_size, embedding_dim),
                                       jnp.float32),
        # forward-direction RNN cell (weights stored (in, out))
        "wih_f": u(ks[1], (embedding_dim, hidden_dim), k_rnn),
        "whh_f": u(ks[2], (hidden_dim, hidden_dim), k_rnn),
        "b_f":   u(ks[3], (1, hidden_dim), k_rnn)
                 + u(ks[4], (1, hidden_dim), k_rnn),        # b_ih + b_hh
        # backward-direction RNN cell
        "wih_b": u(ks[5], (embedding_dim, hidden_dim), k_rnn),
        "b_b":   u(ks[6], (1, hidden_dim), k_rnn)
                 + u(ks[7], (1, hidden_dim), k_rnn),        # b_ih_rev + b_hh_rev
        # fc1: Linear(2H, 64), fc2: Linear(64, 1)
        "w1": u(ks[8], (2 * hidden_dim, 64), k_fc1),
        "b1": u(ks[9], (1, 64), k_fc1),
        "w2": u(ks[10], (64, 1), k_fc2),
        "b2": u(ks[11], (1, 1), k_fc2),
    }


def reference_kernel_math(x_tokens, params):
    # Pure-JAX reference that mirrors the kernel's math (bf16 carry, bf16
    # matmul operands, f32 accumulation, folded input projection, same tanh
    # precision) for a tight check.
    bf16_tanh = _eup_supports_bf16()
    xproj_f, xproj_b = _precompute_inputs(x_tokens, params)
    whh = params["whh_f"].astype(jnp.bfloat16)
    hidden = whh.shape[0]
    batch, seq_len = x_tokens.shape
    h = jnp.zeros((batch, hidden), jnp.bfloat16)
    for t in range(seq_len):
        pre = jnp.dot(h, whh, preferred_element_type=jnp.float32)
        z = pre + xproj_f[t].astype(jnp.float32)
        if bf16_tanh:
            h = jnp.tanh(z.astype(jnp.bfloat16))
        else:
            h = jnp.tanh(z).astype(jnp.bfloat16)
    h_bwd = jnp.tanh(xproj_b)
    w1t = params["w1"][:hidden].astype(jnp.bfloat16)
    w1b = params["w1"][hidden:].astype(jnp.bfloat16)
    h1 = jnp.maximum(
        jnp.dot(h, w1t, preferred_element_type=jnp.float32)
        + jnp.dot(h_bwd.astype(jnp.bfloat16), w1b,
                  preferred_element_type=jnp.float32)
        + params["b1"], 0.0)
    logit = jnp.sum(h1 * params["w2"].T, axis=-1, keepdims=True) + params["b2"]
    return jax.nn.sigmoid(logit)


def reference_forward_f32(x_tokens, params):
    # Full-f32 reference of the original PyTorch semantics (looser check
    # covering the intentional bf16 precision trade-off).
    emb = jnp.take(params["embedding"], x_tokens, axis=0)
    batch, seq_len, _ = emb.shape
    hidden = params["wih_f"].shape[1]
    h = jnp.zeros((batch, hidden), jnp.float32)
    for t in range(seq_len):
        h = jnp.tanh(emb[:, t, :] @ params["wih_f"]
                     + h @ params["whh_f"] + params["b_f"])
    h_b = jnp.tanh(emb[:, -1, :] @ params["wih_b"] + params["b_b"])
    feat = jnp.concatenate([h, h_b], axis=-1)
    h1 = jnp.maximum(feat @ params["w1"] + params["b1"], 0.0)
    return jax.nn.sigmoid(h1 @ params["w2"] + params["b2"])


if __name__ == "__main__":
    VOCAB, B, T = 50, 2, 8
    key = jax.random.PRNGKey(0)
    k_tok, k_par = jax.random.split(key)

    x = jax.random.randint(k_tok, (B, T), 0, VOCAB, dtype=jnp.int32)
    params = init_params(k_par, VOCAB, embedding_dim=100, hidden_dim=128)

    forward = jax.jit(rnn_model_forward)
    out = jax.block_until_ready(forward(x, params))

    assert out.shape == (B, 1), out.shape
    assert bool(jnp.all(jnp.isfinite(out)))

    ref_k = reference_kernel_math(x, params)
    assert jnp.allclose(out, ref_k, atol=2e-3, rtol=2e-3), (out, ref_k)

    ref_f32 = reference_forward_f32(x, params)
    assert jnp.allclose(out, ref_f32, atol=3e-2, rtol=3e-2), (out, ref_f32)

    print("KERNEL_OK")
</pallas_src>

<mosaic_0001>
module attributes {stable_mosaic.version = 11 : i64} {
  func.func @_rnn_kernel(%arg0: i32, %arg1: i32, %arg2: memref<8x8x128xbf16, #tpu.memory_space<vmem>>, %arg3: memref<8x128xf32, #tpu.memory_space<vmem>>, %arg4: memref<128x128xbf16, #tpu.memory_space<vmem>>, %arg5: memref<128x64xbf16, #tpu.memory_space<vmem>>, %arg6: memref<128x64xbf16, #tpu.memory_space<vmem>>, %arg7: memref<1x64xf32, #tpu.memory_space<vmem>>, %arg8: memref<1x64xf32, #tpu.memory_space<vmem>>, %arg9: memref<1x1xf32, #tpu.memory_space<vmem>>, %arg10: memref<8x1xf32, #tpu.memory_space<vmem>>, %arg11: memref<8x128xbf16, #tpu.memory_space<vmem>>) attributes {dimension_semantics = [#tpu.dimension_semantics<parallel>, #tpu.dimension_semantics<arbitrary>], iteration_bounds = array<i64: 1, 1>, scalar_prefetch = 0 : i64, scratch_operands = 1 : i64, tpu.core_type = #tpu.core_type<tc>, window_params = [{transform_indices = @transform_0, window_bounds = array<i64: 8, 8, 128>}, {transform_indices = @transform_1, window_bounds = array<i64: 8, 128>}, {pipeline_mode = #tpu.pipeline_mode<synchronous>, transform_indices = @transform_2, window_bounds = array<i64: 128, 128>}, {pipeline_mode = #tpu.pipeline_mode<synchronous>, transform_indices = @transform_3, window_bounds = array<i64: 128, 64>}, {pipeline_mode = #tpu.pipeline_mode<synchronous>, transform_indices = @transform_4, window_bounds = array<i64: 128, 64>}, {pipeline_mode = #tpu.pipeline_mode<synchronous>, transform_indices = @transform_5, window_bounds = array<i64: 1, 64>}, {pipeline_mode = #tpu.pipeline_mode<synchronous>, transform_indices = @transform_6, window_bounds = array<i64: 1, 64>}, {pipeline_mode = #tpu.pipeline_mode<synchronous>, transform_indices = @transform_7, window_bounds = array<i64: 1, 1>}, {transform_indices = @transform_8, window_bounds = array<i64: 8, 1>}]} {
    %c0_i32 = arith.constant 0 : i32
    %0 = arith.cmpi eq, %arg1, %c0_i32 : i32
    %1 = arith.extui %0 : i1 to i32
    %c0_i32_0 = arith.constant 0 : i32
    %2 = arith.cmpi ne, %1, %c0_i32_0 : i32
    scf.if %2 {
      %cst_32 = arith.constant 0.000000e+00 : bf16
      %73 = vector.broadcast %cst_32 : bf16 to vector<8x128xbf16>
      %c0_33 = arith.constant 0 : index
      %c0_34 = arith.constant 0 : index
      %74 = vector.load %arg11[%c0_33, %c0_34] : memref<8x128xbf16, #tpu.memory_space<vmem>>, vector<8x128xbf16>
      tpu.vector_store %arg11[%c0_33, %c0_34], %73 {strides = array<i32>} : memref<8x128xbf16, #tpu.memory_space<vmem>>, vector<8x128xbf16>,
    } else {
    }
    %c0 = arith.constant 0 : index
    %c0_1 = arith.constant 0 : index
    %3 = vector.load %arg4[%c0, %c0_1] : memref<128x128xbf16, #tpu.memory_space<vmem>>, vector<128x128xbf16>
    %c0_2 = arith.constant 0 : index
    %c0_3 = arith.constant 0 : index
    %4 = vector.load %arg11[%c0_2, %c0_3] : memref<8x128xbf16, #tpu.memory_space<vmem>>, vector<8x128xbf16>
    %c0_i32_4 = arith.constant 0 : i32
    %5 = arith.index_cast %c0_i32_4 : i32 to index
    %c0_5 = arith.constant 0 : index
    %c0_6 = arith.constant 0 : index
    %6 = vector.load %arg2[%5, %c0_5, %c0_6] : memref<8x8x128xbf16, #tpu.memory_space<vmem>>, vector<1x8x128xbf16>
    %7 = vector.shape_cast %6 : vector<1x8x128xbf16> to vector<8x128xbf16>
    %cst = arith.constant dense<0.000000e+00> : vector<8x128xf32>
    %8 = tpu.matmul %4, %3, %cst {dimension_numbers = #tpu.dot_dimension_numbers<[1], [0], [0], [1], [0, 0, 1, 1], [], []>} : vector<8x128xbf16>, vector<128x128xbf16>, vector<8x128xf32> -> vector<8x128xf32>
    %9 = arith.extf %7 : vector<8x128xbf16> to vector<8x128xf32>
    %10 = arith.addf %8, %9 : vector<8x128xf32>
    %11 = math.tanh %10 : vector<8x128xf32>
    %12 = arith.truncf %11 : vector<8x128xf32> to vector<8x128xbf16>
    %c1_i32 = arith.constant 1 : i32
    %13 = arith.index_cast %c1_i32 : i32 to index
    %c0_7 = arith.constant 0 : index
    %c0_8 = arith.constant 0 : index
    %14 = vector.load %arg2[%13, %c0_7, %c0_8] : memref<8x8x128xbf16, #tpu.memory_space<vmem>>, vector<1x8x128xbf16>
    %15 = vector.shape_cast %14 : vector<1x8x128xbf16> to vector<8x128xbf16>
    %cst_9 = arith.constant dense<0.000000e+00> : vector<8x128xf32>
    %16 = tpu.matmul %12, %3, %cst_9 {dimension_numbers = #tpu.dot_dimension_numbers<[1], [0], [0], [1], [0, 0, 1, 1], [], []>} : vector<8x128xbf16>, vector<128x128xbf16>, vector<8x128xf32> -> vector<8x128xf32>
    %17 = arith.extf %15 : vector<8x128xbf16> to vector<8x128xf32>
    %18 = arith.addf %16, %17 : vector<8x128xf32>
    %19 = math.tanh %18 : vector<8x128xf32>
    %20 = arith.truncf %19 : vector<8x128xf32> to vector<8x128xbf16>
    %c2_i32 = arith.constant 2 : i32
    %21 = arith.index_cast %c2_i32 : i32 to index
    %c0_10 = arith.constant 0 : index
    %c0_11 = arith.constant 0 : index
    %22 = vector.load %arg2[%21, %c0_10, %c0_11] : memref<8x8x128xbf16, #tpu.memory_space<vmem>>, vector<1x8x128xbf16>
    %23 = vector.shape_cast %22 : vector<1x8x128xbf16> to vector<8x128xbf16>
    %cst_12 = arith.constant dense<0.000000e+00> : vector<8x128xf32>
    %24 = tpu.matmul %20, %3, %cst_12 {dimension_numbers = #tpu.dot_dimension_numbers<[1], [0], [0], [1], [0, 0, 1, 1], [], []>} : vector<8x128xbf16>, vector<128x128xbf16>, vector<8x128xf32> -> vector<8x128xf32>
    %25 = arith.extf %23 : vector<8x128xbf16> to vector<8x128xf32>
    %26 = arith.addf %24, %25 : vector<8x128xf32>
    %27 = math.tanh %26 : vector<8x128xf32>
    %28 = arith.truncf %27 : vector<8x128xf32> to vector<8x128xbf16>
    %c3_i32 = arith.constant 3 : i32
    %29 = arith.index_cast %c3_i32 : i32 to index
    %c0_13 = arith.constant 0 : index
    %c0_14 = arith.constant 0 : index
    %30 = vector.load %arg2[%29, %c0_13, %c0_14] : memref<8x8x128xbf16, #tpu.memory_space<vmem>>, vector<1x8x128xbf16>
    %31 = vector.shape_cast %30 : vector<1x8x128xbf16> to vector<8x128xbf16>
    %cst_15 = arith.constant dense<0.000000e+00> : vector<8x128xf32>
    %32 = tpu.matmul %28, %3, %cst_15 {dimension_numbers = #tpu.dot_dimension_numbers<[1], [0], [0], [1], [0, 0, 1, 1], [], []>} : vector<8x128xbf16>, vector<128x128xbf16>, vector<8x128xf32> -> vector<8x128xf32>
    %33 = arith.extf %31 : vector<8x128xbf16> to vector<8x128xf32>
    %34 = arith.addf %32, %33 : vector<8x128xf32>
    %35 = math.tanh %34 : vector<8x128xf32>
    %36 = arith.truncf %35 : vector<8x128xf32> to vector<8x128xbf16>
    %c4_i32 = arith.constant 4 : i32
    %37 = arith.index_cast %c4_i32 : i32 to index
    %c0_16 = arith.constant 0 : index
    %c0_17 = arith.constant 0 : index
    %38 = vector.load %arg2[%37, %c0_16, %c0_17] : memref<8x8x128xbf16, #tpu.memory_space<vmem>>, vector<1x8x128xbf16>
    %39 = vector.shape_cast %38 : vector<1x8x128xbf16> to vector<8x128xbf16>
    %cst_18 = arith.constant dense<0.000000e+00> : vector<8x128xf32>
    %40 = tpu.matmul %36, %3, %cst_18 {dimension_numbers = #tpu.dot_dimension_numbers<[1], [0], [0], [1], [0, 0, 1, 1], [], []>} : vector<8x128xbf16>, vector<128x128xbf16>, vector<8x128xf32> -> vector<8x128xf32>
    %41 = arith.extf %39 : vector<8x128xbf16> to vector<8x128xf32>
    %42 = arith.addf %40, %41 : vector<8x128xf32>
    %43 = math.tanh %42 : vector<8x128xf32>
    %44 = arith.truncf %43 : vector<8x128xf32> to vector<8x128xbf16>
    %c5_i32 = arith.constant 5 : i32
    %45 = arith.index_cast %c5_i32 : i32 to index
    %c0_19 = arith.constant 0 : index
    %c0_20 = arith.constant 0 : index
    %46 = vector.load %arg2[%45, %c0_19, %c0_20] : memref<8x8x128xbf16, #tpu.memory_space<vmem>>, vector<1x8x128xbf16>
    %47 = vector.shape_cast %46 : vector<1x8x128xbf16> to vector<8x128xbf16>
    %cst_21 = arith.constant dense<0.000000e+00> : vector<8x128xf32>
    %48 = tpu.matmul %44, %3, %cst_21 {dimension_numbers = #tpu.dot_dimension_numbers<[1], [0], [0], [1], [0, 0, 1, 1], [], []>} : vector<8x128xbf16>, vector<128x128xbf16>, vector<8x128xf32> -> vector<8x128xf32>
    %49 = arith.extf %47 : vector<8x128xbf16> to vector<8x128xf32>
    %50 = arith.addf %48, %49 : vector<8x128xf32>
    %51 = math.tanh %50 : vector<8x128xf32>
    %52 = arith.truncf %51 : vector<8x128xf32> to vector<8x128xbf16>
    %c6_i32 = arith.constant 6 : i32
    %53 = arith.index_cast %c6_i32 : i32 to index
    %c0_22 = arith.constant 0 : index
    %c0_23 = arith.constant 0 : index
    %54 = vector.load %arg2[%53, %c0_22, %c0_23] : memref<8x8x128xbf16, #tpu.memory_space<vmem>>, vector<1x8x128xbf16>
    %55 = vector.shape_cast %54 : vector<1x8x128xbf16> to vector<8x128xbf16>
    %cst_24 = arith.constant dense<0.000000e+00> : vector<8x128xf32>
    %56 = tpu.matmul %52, %3, %cst_24 {dimension_numbers = #tpu.dot_dimension_numbers<[1], [0], [0], [1], [0, 0, 1, 1], [], []>} : vector<8x128xbf16>, vector<128x128xbf16>, vector<8x128xf32> -> vector<8x128xf32>
    %57 = arith.extf %55 : vector<8x128xbf16> to vector<8x128xf32>
    %58 = arith.addf %56, %57 : vector<8x128xf32>
    %59 = math.tanh %58 : vector<8x128xf32>
    %60 = arith.truncf %59 : vector<8x128xf32> to vector<8x128xbf16>
    %c7_i32 = arith.constant 7 : i32
    %61 = arith.index_cast %c7_i32 : i32 to index
    %c0_25 = arith.constant 0 : index
    %c0_26 = arith.constant 0 : index
    %62 = vector.load %arg2[%61, %c0_25, %c0_26] : memref<8x8x128xbf16, #tpu.memory_space<vmem>>, vector<1x8x128xbf16>
    %63 = vector.shape_cast %62 : vector<1x8x128xbf16> to vector<8x128xbf16>
    %cst_27 = arith.constant dense<0.000000e+00> : vector<8x128xf32>
    %64 = tpu.matmul %60, %3, %cst_27 {dimension_numbers = #tpu.dot_dimension_numbers<[1], [0], [0], [1], [0, 0, 1, 1], [], []>} : vector<8x128xbf16>, vector<128x128xbf16>, vector<8x128xf32> -> vector<8x128xf32>
    %65 = arith.extf %63 : vector<8x128xbf16> to vector<8x128xf32>
    %66 = arith.addf %64, %65 : vector<8x128xf32>
    %67 = math.tanh %66 : vector<8x128xf32>
    %68 = arith.truncf %67 : vector<8x128xf32> to vector<8x128xbf16>
    %c8_i32 = arith.constant 8 : i32
    %c0_28 = arith.constant 0 : index
    %c0_29 = arith.constant 0 : index
    %69 = vector.load %arg11[%c0_28, %c0_29] : memref<8x128xbf16, #tpu.memory_space<vmem>>, vector<8x128xbf16>
    tpu.vector_store %arg11[%c0_28, %c0_29], %68 {strides = array<i32>} : memref<8x128xbf16, #tpu.memory_space<vmem>>, vector<8x128xbf16>,
    %c0_i32_30 = arith.constant 0 : i32
    %70 = arith.cmpi eq, %arg1, %c0_i32_30 : i32
    %71 = arith.extui %70 : i1 to i32
    %c0_i32_31 = arith.constant 0 : i32
    %72 = arith.cmpi ne, %71, %c0_i32_31 : i32
    scf.if %72 {
      %c0_32 = arith.constant 0 : index
      %c0_33 = arith.constant 0 : index
      %73 = vector.load %arg11[%c0_32, %c0_33] : memref<8x128xbf16, #tpu.memory_space<vmem>>, vector<8x128xbf16>
      %c0_34 = arith.constant 0 : index
      %c0_35 = arith.constant 0 : index
      %74 = vector.load %arg3[%c0_34, %c0_35] : memref<8x128xf32, #tpu.memory_space<vmem>>, vector<8x128xf32>
      %75 = math.tanh %74 : vector<8x128xf32>
      %c0_36 = arith.constant 0 : index
      %c0_37 = arith.constant 0 : index
      %76 = vector.load %arg5[%c0_36, %c0_37] : memref<128x64xbf16, #tpu.memory_space<vmem>>, vector<128x64xbf16>
      %cst_38 = arith.constant dense<0.000000e+00> : vector<8x64xf32>
      %77 = tpu.matmul %73, %76, %cst_38 {dimension_numbers = #tpu.dot_dimension_numbers<[1], [0], [0], [1], [0, 0, 1, 1], [], []>} : vector<8x128xbf16>, vector<128x64xbf16>, vector<8x64xf32> -> vector<8x64xf32>
      %78 = arith.truncf %75 : vector<8x128xf32> to vector<8x128xbf16>
      %c0_39 = arith.constant 0 : index
      %c0_40 = arith.constant 0 : index
      %79 = vector.load %arg6[%c0_39, %c0_40] : memref<128x64xbf16, #tpu.memory_space<vmem>>, vector<128x64xbf16>
      %cst_41 = arith.constant dense<0.000000e+00> : vector<8x64xf32>
      %80 = tpu.matmul %78, %79, %cst_41 {dimension_numbers = #tpu.dot_dimension_numbers<[1], [0], [0], [1], [0, 0, 1, 1], [], []>} : vector<8x128xbf16>, vector<128x64xbf16>, vector<8x64xf32> -> vector<8x64xf32>
      %81 = arith.addf %77, %80 : vector<8x64xf32>
      %c0_42 = arith.constant 0 : index
      %c0_43 = arith.constant 0 : index
      %82 = vector.load %arg7[%c0_42, %c0_43] : memref<1x64xf32, #tpu.memory_space<vmem>>, vector<1x64xf32>
      %83 = vector.broadcast %82 : vector<1x64xf32> to vector<8x64xf32>
      %84 = arith.addf %81, %83 : vector<8x64xf32>
      %cst_44 = arith.constant 0.000000e+00 : f32
      %85 = vector.broadcast %cst_44 : f32 to vector<8x64xf32>
      %86 = arith.maximumf %84, %85 : vector<8x64xf32>
      %c0_45 = arith.constant 0 : index
      %c0_46 = arith.constant 0 : index
      %87 = vector.load %arg8[%c0_45, %c0_46] : memref<1x64xf32, #tpu.memory_space<vmem>>, vector<1x64xf32>
      %88 = vector.broadcast %87 : vector<1x64xf32> to vector<8x64xf32>
      %89 = arith.mulf %86, %88 : vector<8x64xf32>
      %cst_47 = arith.constant dense<0.000000e+00> : vector<8xf32>
      %90 = vector.multi_reduction <add>, %89, %cst_47 [1] : vector<8x64xf32> to vector<8xf32>
      %91 = vector.shape_cast %90 : vector<8xf32> to vector<8x1xf32>
      %c0_48 = arith.constant 0 : index
      %c0_49 = arith.constant 0 : index
      %92 = vector.load %arg9[%c0_48, %c0_49] : memref<1x1xf32, #tpu.memory_space<vmem>>, vector<1x1xf32>
      %93 = vector.broadcast %92 : vector<1x1xf32> to vector<8x1xf32>
      %94 = arith.addf %91, %93 : vector<8x1xf32>
      %95 = arith.negf %94 : vector<8x1xf32>
      %96 = math.exp %95 : vector<8x1xf32>
      %cst_50 = arith.constant 1.000000e+00 : f32
      %97 = vector.broadcast %cst_50 : f32 to vector<8x1xf32>
      %98 = arith.addf %97, %96 : vector<8x1xf32>
      %99 = arith.divf %97, %98 : vector<8x1xf32>
      %c0_51 = arith.constant 0 : index
      %c0_52 = arith.constant 0 : index
      %100 = vector.load %arg10[%c0_51, %c0_52] : memref<8x1xf32, #tpu.memory_space<vmem>>, vector<8x1xf32>
      tpu.vector_store %arg10[%c0_51, %c0_52], %99 {strides = array<i32>} : memref<8x1xf32, #tpu.memory_space<vmem>>, vector<8x1xf32>,
    } else {
    }
    return
  }
  func.func @transform_0(%arg0: i32, %arg1: i32) -> (i32, i32, i32) {
    %c0_i32 = arith.constant 0 : i32
    %c0_i32_0 = arith.constant 0 : i32
    return %arg1, %arg0, %c0_i32 : i32, i32, i32
  }
  func.func @transform_1(%arg0: i32, %arg1: i32) -> (i32, i32) {
    %c0_i32 = arith.constant 0 : i32
    %c0_i32_0 = arith.constant 0 : i32
    return %arg0, %c0_i32 : i32, i32
  }
  func.func @transform_2(%arg0: i32, %arg1: i32) -> (i32, i32) {
    %c0_i32 = arith.constant 0 : i32
    %c0_i32_0 = arith.constant 0 : i32
    %c0_i32_1 = arith.constant 0 : i32
    return %c0_i32, %c0_i32_0 : i32, i32
  }
  func.func @transform_3(%arg0: i32, %arg1: i32) -> (i32, i32) {
    %c0_i32 = arith.constant 0 : i32
    %c0_i32_0 = arith.constant 0 : i32
    %c0_i32_1 = arith.constant 0 : i32
    return %c0_i32, %c0_i32_0 : i32, i32
  }
  func.func @transform_4(%arg0: i32, %arg1: i32) -> (i32, i32) {
    %c0_i32 = arith.constant 0 : i32
    %c0_i32_0 = arith.constant 0 : i32
    %c0_i32_1 = arith.constant 0 : i32
    return %c0_i32, %c0_i32_0 : i32, i32
  }
  func.func @transform_5(%arg0: i32, %arg1: i32) -> (i32, i32) {
    %c0_i32 = arith.constant 0 : i32
    %c0_i32_0 = arith.constant 0 : i32
    %c0_i32_1 = arith.constant 0 : i32
    return %c0_i32, %c0_i32_0 : i32, i32
  }
  func.func @transform_6(%arg0: i32, %arg1: i32) -> (i32, i32) {
    %c0_i32 = arith.constant 0 : i32
    %c0_i32_0 = arith.constant 0 : i32
    %c0_i32_1 = arith.constant 0 : i32
    return %c0_i32, %c0_i32_0 : i32, i32
  }
  func.func @transform_7(%arg0: i32, %arg1: i32) -> (i32, i32) {
    %c0_i32 = arith.constant 0 : i32
    %c0_i32_0 = arith.constant 0 : i32
    %c0_i32_1 = arith.constant 0 : i32
    return %c0_i32, %c0_i32_0 : i32, i32
  }
  func.func @transform_8(%arg0: i32, %arg1: i32) -> (i32, i32) {
    %c0_i32 = arith.constant 0 : i32
    %c0_i32_0 = arith.constant 0 : i32
    return %arg0, %c0_i32 : i32, i32
  }
}

</mosaic_0001>

<llo_original>
// kernel: rnn_model_forward.1
$region0: #{rnn_model_forward.1}
  #allocation0 [shape = 'u32[]', space=smem, size = 0x4, offset = 0x4, fixed_abs, tag = 'smem constant byte address 0x4 - core index']
  #allocation1 [shape = 'u32[144,128]{1,0:T(1,128)}', space=vmem, size = 0x12000, scoped, tag = 'internal scratch']
  #allocation2 [shape = 'bf16[8,128]{1,0:T(8,128)(2,1)}', space=vmem, size = 0x800, scoped, tag = 'scratch operand']
  #allocation3 [shape = 'f32[1,1]{1,0:T(1,128)S(1)}', space=vmem, size = 0x200, scoped, tag = 'scoped memory for rnn_model_forward.1']
  %s0 = inlined_call_operand.vmem [shape: bf16[8,8,128], index: 0, kind: input, shape index: {}]
  %s1 = inlined_call_operand.vmem [shape: f32[8,128], index: 1, kind: input, shape index: {}]
  %s2 = inlined_call_operand.vmem [shape: bf16[128,128], index: 2, kind: input, shape index: {}]
  %s3 = inlined_call_operand.vmem [shape: bf16[128,64], index: 3, kind: input, shape index: {}]
  %s4 = inlined_call_operand.vmem [shape: bf16[128,64], index: 4, kind: input, shape index: {}]
  %s5 = inlined_call_operand.vmem [shape: f32[1,64], index: 5, kind: input, shape index: {}]
  %s6 = inlined_call_operand.vmem [shape: f32[1,64], index: 6, kind: input, shape index: {}]
  %s7 = inlined_call_operand.<no memory space> [shape: f32[1,1], index: 7, kind: input, shape index: {}]
  %s8 = inlined_call_operand.vmem [shape: f32[8,1], index: 8, kind: output, shape index: {}]
  %s9 = sld [smem:[#allocation0]]
  $region50: #{rnn_model_forward.1} parent=0
    _
  %s11 = ssub.s32 1, %s9
  %s12 = scalar_select 0, %s11, %s9
  %v13 = vstv %s7
  %14 = vst [vmem:[#allocation3] sm:$0x1] %v13
  // Predicated region
  $region2: #{rnn_model_forward.1} parent=0 // pred_check
    _
  $region3: #{rnn_model_forward.1} parent=0 // pred_check_branch
    %16 = sbr.rel (0) target = $region5
  $region4: #{rnn_model_forward.1} parent=0 // pred_region
    _
  $region5: #{rnn_model_forward.1} parent=0 // pred_fallthru
    _
  // Predicated region
  $region6: #{rnn_model_forward.1} parent=0 // pred_check
    _
  $region7: #{rnn_model_forward.1} parent=0 // pred_check_branch
    %18 = sbr.rel (0) target = $region9
  $region8: #{rnn_model_forward.1} parent=0 // pred_region
    _
  $region9: #{rnn_model_forward.1} parent=0 // pred_fallthru
    _
  // Predicated region
  $region10: #{rnn_model_forward.1} parent=0 // pred_check
    _
  $region11: #{rnn_model_forward.1} parent=0 // pred_check_branch
    %20 = sbr.rel (0) target = $region13
  $region12: #{rnn_model_forward.1} parent=0 // pred_region
    _
  $region13: #{rnn_model_forward.1} parent=0 // pred_fallthru
    _
  // Predicated region
  $region14: #{rnn_model_forward.1} parent=0 // pred_check
    _
  $region15: #{rnn_model_forward.1} parent=0 // pred_check_branch
    %22 = sbr.rel (0) target = $region17
  $region16: #{rnn_model_forward.1} parent=0 // pred_region
    _
  $region17: #{rnn_model_forward.1} parent=0 // pred_fallthru
    _
  // Predicated region
  $region18: #{rnn_model_forward.1} parent=0 // pred_check
    _
  $region19: #{rnn_model_forward.1} parent=0 // pred_check_branch
    %24 = sbr.rel (0) target = $region21
  $region20: #{rnn_model_forward.1} parent=0 // pred_region
    _
  $region21: #{rnn_model_forward.1} parent=0 // pred_fallthru
    _
  // Predicated region
  $region22: #{rnn_model_forward.1} parent=0 // pred_check
    _
  $region23: #{rnn_model_forward.1} parent=0 // pred_check_branch
    %26 = sbr.rel (0) target = $region25
  $region24: #{rnn_model_forward.1} parent=0 // pred_region
    _
  $region25: #{rnn_model_forward.1} parent=0 // pred_fallthru
    _
  // Predicated region
  $region26: #{rnn_model_forward.1} parent=0 // pred_check
    _
  $region27: #{rnn_model_forward.1} parent=0 // pred_check_branch
    %28 = sbr.rel (0) target = $region29
  $region28: #{rnn_model_forward.1} parent=0 // pred_region
    _
  $region29: #{rnn_model_forward.1} parent=0 // pred_fallthru
    _
  // Predicated region
  $region30: #{rnn_model_forward.1} parent=0 // pred_check
    _
  $region31: #{rnn_model_forward.1} parent=0 // pred_check_branch
    %30 = sbr.rel (0) target = $region33
  $region32: #{rnn_model_forward.1} parent=0 // pred_region
    _
  $region33: #{rnn_model_forward.1} parent=0 // pred_fallthru
    _
  %p32 = scmp.eq.s32.totalorder 0, 0
  // Predicated region
  $region34: #{rnn_model_forward.1} parent=0 // pred_check
    %p33 = pneg %p32
  $region35: #{rnn_model_forward.1} parent=0 // pred_check_branch
    %35 = sbr.rel (%p33) target = $region37
  $region36: #{rnn_model_forward.1} parent=0 // pred_region
    %36 = vst [vmem:[#allocation2] sm:$0xf] 0
  $region37: #{rnn_model_forward.1} parent=0 // pred_fallthru
    _
  %v37 = vld [vmem:[%s2] sm:$0xf]
  %v38 = vld [vmem:[%s2 + $0x4] sm:$0xf]
  %v39 = vld [vmem:[%s2 + $0x8] sm:$0xf]
  %v40 = vld [vmem:[%s2 + $0xc] sm:$0xf]
  %v41 = vld [vmem:[%s2 + $0x10] sm:$0xf]
  %v42 = vld [vmem:[%s2 + $0x14] sm:$0xf]
  %v43 = vld [vmem:[%s2 + $0x18] sm:$0xf]
  %v44 = vld [vmem:[%s2 + $0x1c] sm:$0xf]
  %v45 = vld [vmem:[%s2 + $0x20] sm:$0xf]
  %v46 = vld [vmem:[%s2 + $0x24] sm:$0xf]
  %v47 = vld [vmem:[%s2 + $0x28] sm:$0xf]
  %v48 = vld [vmem:[%s2 + $0x2c] sm:$0xf]
  %v49 = vld [vmem:[%s2 + $0x30] sm:$0xf]
  %v50 = vld [vmem:[%s2 + $0x34] sm:$0xf]
  %v51 = vld [vmem:[%s2 + $0x38] sm:$0xf]
  %v52 = vld [vmem:[%s2 + $0x3c] sm:$0xf]
  %v53 = vld [vmem:[#allocation2] sm:$0xf]
  %v54 = vld [vmem:[%s0] sm:$0xf]
  %v55 = vunpack.c.l.bf16 %v54
  %v72 = vunpack.c.l.b16 %v37
  %v73 = vunpack.c.l.b16 %v38
  %v74 = vunpack.c.l.b16 %v39
  %v75 = vunpack.c.l.b16 %v40
  %v76 = vunpack.c.l.b16 %v41
  %v77 = vunpack.c.l.b16 %v42
  %v78 = vunpack.c.l.b16 %v43
  %v79 = vunpack.c.l.b16 %v44
  %v80 = vunpack.c.l.b16 %v45
  %v81 = vunpack.c.l.b16 %v46
  %v82 = vunpack.c.l.b16 %v47
  %v83 = vunpack.c.l.b16 %v48
  %v84 = vunpack.c.l.b16 %v49
  %v85 = vunpack.c.l.b16 %v50
  %v86 = vunpack.c.l.b16 %v51
  %v87 = vunpack.c.l.b16 %v52
  %v88 = vpack.c.b16 %v73, %v72
  %v89 = vpack.c.b16 %v75, %v74
  %v90 = vpack.c.b16 %v77, %v76
  %v91 = vpack.c.b16 %v79, %v78
  %v92 = vpack.c.b16 %v81, %v80
  %v93 = vpack.c.b16 %v83, %v82
  %v94 = vpack.c.b16 %v85, %v84
  %v95 = vpack.c.b16 %v87, %v86
  %104 = vmatprep.subr.bf16.mxu0 0
  %105 = vmatpush1.bf16.msra.mxu0 %v95
  %106 = vmatprep.subr.bf16.mxu0 0
  %107 = vmatpush1.bf16.msra.mxu0 %v94
  %108 = vmatprep.subr.bf16.mxu0 0
  %109 = vmatpush1.bf16.msra.mxu0 %v93
  %110 = vmatprep.subr.bf16.mxu0 0
  %111 = vmatpush1.bf16.msra.mxu0 %v92
  %112 = vmatprep.subr.bf16.mxu0 0
  %113 = vmatpush1.bf16.msra.mxu0 %v91
  %114 = vmatprep.subr.bf16.mxu0 0
  %115 = vmatpush1.bf16.msra.mxu0 %v90
  %116 = vmatprep.subr.bf16.mxu0 0
  %117 = vmatpush1.bf16.msra.mxu0 %v89
  %118 = vmatprep.subr.bf16.mxu0 0
  %119 = vmatpush1.bf16.msra.mxu0 %v88
  %120 = vmatprep.subr.bf16.mxu0 0
  %121 = vmatpush2.bf16.msra.mxu0 0
  %122 = vmatprep.subr.bf16.mxu0 0
  %123 = vmatpush2.bf16.msra.mxu0 0
  %124 = vmatprep.subr.bf16.mxu0 0
  %125 = vmatpush2.bf16.msra.mxu0 0
  %126 = vmatprep.subr.bf16.mxu0 0
  %127 = vmatpush2.bf16.msra.mxu0 0
  %128 = vmatprep.subr.bf16.mxu0 0
  %129 = vmatpush2.bf16.msra.mxu0 0
  %130 = vmatprep.subr.bf16.mxu0 0
  %131 = vmatpush2.bf16.msra.mxu0 0
  %132 = vmatprep.subr.bf16.mxu0 0
  %133 = vmatpush2.bf16.msra.mxu0 0
  %134 = vmatprep.subr.bf16.mxu0 0
  %135 = vmatpush2.bf16.msra.mxu0 0
  %136 = vmatprep.mubr.bf16.mxu0 0
  %137 = vmatmul.mubr.bf16.gmra.mxu0 %v53
  %v138 = vpop.f32.mrf.mxu0
  %v139 = vadd.f32 %v55, %v138
  %v140 = vpop.f32.mrf.mxu0
  %v141 = vpop.f32.mrf.mxu0
  %v142 = vpop.f32.mrf.mxu0
  %143 = vdwg.mxu0
  %v144 = vtanh.pop %v139
  %v145 = vpack.c.bf16 %v144, %v144
  %s146 = scalar_lea.vmem %s0, 4
  %v147 = vld [vmem:[%s146] sm:$0xf]
  %v148 = vunpack.c.l.bf16 %v147
  %149 = vmatprep.subr.bf16.mxu0 0
  %150 = vmatpush1.bf16.msra.mxu0 %v95
  %151 = vmatprep.subr.bf16.mxu0 0
  %152 = vmatpush1.bf16.msra.mxu0 %v94
  %153 = vmatprep.subr.bf16.mxu0 0
  %154 = vmatpush1.bf16.msra.mxu0 %v93
  %155 = vmatprep.subr.bf16.mxu0 0
  %156 = vmatpush1.bf16.msra.mxu0 %v92
  %157 = vmatprep.subr.bf16.mxu0 0
  %158 = vmatpush1.bf16.msra.mxu0 %v91
  %159 = vmatprep.subr.bf16.mxu0 0
  %160 = vmatpush1.bf16.msra.mxu0 %v90
  %161 = vmatprep.subr.bf16.mxu0 0
  %162 = vmatpush1.bf16.msra.mxu0 %v89
  %163 = vmatprep.subr.bf16.mxu0 0
  %164 = vmatpush1.bf16.msra.mxu0 %v88
  %165 = vmatprep.subr.bf16.mxu0 0
  %166 = vmatpush2.bf16.msra.mxu0 0
  %167 = vmatprep.subr.bf16.mxu0 0
  %168 = vmatpush2.bf16.msra.mxu0 0
  %169 = vmatprep.subr.bf16.mxu0 0
  %170 = vmatpush2.bf16.msra.mxu0 0
  %171 = vmatprep.subr.bf16.mxu0 0
  %172 = vmatpush2.bf16.msra.mxu0 0
  %173 = vmatprep.subr.bf16.mxu0 0
  %174 = vmatpush2.bf16.msra.mxu0 0
  %175 = vmatprep.subr.bf16.mxu0 0
  %176 = vmatpush2.bf16.msra.mxu0 0
  %177 = vmatprep.subr.bf16.mxu0 0
  %178 = vmatpush2.bf16.msra.mxu0 0
  %179 = vmatprep.subr.bf16.mxu0 0
  %180 = vmatpush2.bf16.msra.mxu0 0
  %181 = vmatprep.mubr.bf16.mxu0 0
  %182 = vmatmul.mubr.bf16.gmra.mxu0 %v145
  %v183 = vpop.f32.mrf.mxu0
  %v184 = vadd.f32 %v148, %v183
  %v185 = vpop.f32.mrf.mxu0
  %v186 = vpop.f32.mrf.mxu0
  %v187 = vpop.f32.mrf.mxu0
  %188 = vdwg.mxu0
  %v189 = vtanh.pop %v184
  %v190 = vpack.c.bf16 %v189, %v189
  %s191 = scalar_lea.vmem %s0, 8
  %v192 = vld [vmem:[%s191] sm:$0xf]
  %v193 = vunpack.c.l.bf16 %v192
  %194 = vmatprep.subr.bf16.mxu0 0
  %195 = vmatpush1.bf16.msra.mxu0 %v95
  %196 = vmatprep.subr.bf16.mxu0 0
  %197 = vmatpush1.bf16.msra.mxu0 %v94
  %198 = vmatprep.subr.bf16.mxu0 0
  %199 = vmatpush1.bf16.msra.mxu0 %v93
  %200 = vmatprep.subr.bf16.mxu0 0
  %201 = vmatpush1.bf16.msra.mxu0 %v92
  %202 = vmatprep.subr.bf16.mxu0 0
  %203 = vmatpush1.bf16.msra.mxu0 %v91
  %204 = vmatprep.subr.bf16.mxu0 0
  %205 = vmatpush1.bf16.msra.mxu0 %v90
  %206 = vmatprep.subr.bf16.mxu0 0
  %207 = vmatpush1.bf16.msra.mxu0 %v89
  %208 = vmatprep.subr.bf16.mxu0 0
  %209 = vmatpush1.bf16.msra.mxu0 %v88
  %210 = vmatprep.subr.bf16.mxu0 0
  %211 = vmatpush2.bf16.msra.mxu0 0
  %212 = vmatprep.subr.bf16.mxu0 0
  %213 = vmatpush2.bf16.msra.mxu0 0
  %214 = vmatprep.subr.bf16.mxu0 0
  %215 = vmatpush2.bf16.msra.mxu0 0
  %216 = vmatprep.subr.bf16.mxu0 0
  %217 = vmatpush2.bf16.msra.mxu0 0
  %218 = vmatprep.subr.bf16.mxu0 0
  %219 = vmatpush2.bf16.msra.mxu0 0
  %220 = vmatprep.subr.bf16.mxu0 0
  %221 = vmatpush2.bf16.msra.mxu0 0
  %222 = vmatprep.subr.bf16.mxu0 0
  %223 = vmatpush2.bf16.msra.mxu0 0
  %224 = vmatprep.subr.bf16.mxu0 0
  %225 = vmatpush2.bf16.msra.mxu0 0
  %226 = vmatprep.mubr.bf16.mxu0 0
  %227 = vmatmul.mubr.bf16.gmra.mxu0 %v190
  %v228 = vpop.f32.mrf.mxu0
  %v229 = vadd.f32 %v193, %v228
  %v230 = vpop.f32.mrf.mxu0
  %v231 = vpop.f32.mrf.mxu0
  %v232 = vpop.f32.mrf.mxu0
  %233 = vdwg.mxu0
  %v234 = vtanh.pop %v229
  %v235 = vpack.c.bf16 %v234, %v234
  %s236 = scalar_lea.vmem %s0, 12
  %v237 = vld [vmem:[%s236] sm:$0xf]
  %v238 = vunpack.c.l.bf16 %v237
  %239 = vmatprep.subr.bf16.mxu0 0
  %240 = vmatpush1.bf16.msra.mxu0 %v95
  %241 = vmatprep.subr.bf16.mxu0 0
  %242 = vmatpush1.bf16.msra.mxu0 %v94
  %243 = vmatprep.subr.bf16.mxu0 0
  %244 = vmatpush1.bf16.msra.mxu0 %v93
  %245 = vmatprep.subr.bf16.mxu0 0
  %246 = vmatpush1.bf16.msra.mxu0 %v92
  %247 = vmatprep.subr.bf16.mxu0 0
  %248 = vmatpush1.bf16.msra.mxu0 %v91
  %249 = vmatprep.subr.bf16.mxu0 0
  %250 = vmatpush1.bf16.msra.mxu0 %v90
  %251 = vmatprep.subr.bf16.mxu0 0
  %252 = vmatpush1.bf16.msra.mxu0 %v89
  %253 = vmatprep.subr.bf16.mxu0 0
  %254 = vmatpush1.bf16.msra.mxu0 %v88
  %255 = vmatprep.subr.bf16.mxu0 0
  %256 = vmatpush2.bf16.msra.mxu0 0
  %257 = vmatprep.subr.bf16.mxu0 0
  %258 = vmatpush2.bf16.msra.mxu0 0
  %259 = vmatprep.subr.bf16.mxu0 0
  %260 = vmatpush2.bf16.msra.mxu0 0
  %261 = vmatprep.subr.bf16.mxu0 0
  %262 = vmatpush2.bf16.msra.mxu0 0
  %263 = vmatprep.subr.bf16.mxu0 0
  %264 = vmatpush2.bf16.msra.mxu0 0
  %265 = vmatprep.subr.bf16.mxu0 0
  %266 = vmatpush2.bf16.msra.mxu0 0
  %267 = vmatprep.subr.bf16.mxu0 0
  %268 = vmatpush2.bf16.msra.mxu0 0
  %269 = vmatprep.subr.bf16.mxu0 0
  %270 = vmatpush2.bf16.msra.mxu0 0
  %271 = vmatprep.mubr.bf16.mxu0 0
  %272 = vmatmul.mubr.bf16.gmra.mxu0 %v235
  %v273 = vpop.f32.mrf.mxu0
  %v274 = vadd.f32 %v238, %v273
  %v275 = vpop.f32.mrf.mxu0
  %v276 = vpop.f32.mrf.mxu0
  %v277 = vpop.f32.mrf.mxu0
  %278 = vdwg.mxu0
  %v279 = vtanh.pop %v274
  %v280 = vpack.c.bf16 %v279, %v279
  %s281 = scalar_lea.vmem %s0, 16
  %v282 = vld [vmem:[%s281] sm:$0xf]
  %v283 = vunpack.c.l.bf16 %v282
  %284 = vmatprep.subr.bf16.mxu0 0
  %285 = vmatpush1.bf16.msra.mxu0 %v95
  %286 = vmatprep.subr.bf16.mxu0 0
  %287 = vmatpush1.bf16.msra.mxu0 %v94
  %288 = vmatprep.subr.bf16.mxu0 0
  %289 = vmatpush1.bf16.msra.mxu0 %v93
  %290 = vmatprep.subr.bf16.mxu0 0
  %291 = vmatpush1.bf16.msra.mxu0 %v92
  %292 = vmatprep.subr.bf16.mxu0 0
  %293 = vmatpush1.bf16.msra.mxu0 %v91
  %294 = vmatprep.subr.bf16.mxu0 0
  %295 = vmatpush1.bf16.msra.mxu0 %v90
  %296 = vmatprep.subr.bf16.mxu0 0
  %297 = vmatpush1.bf16.msra.mxu0 %v89
  %298 = vmatprep.subr.bf16.mxu0 0
  %299 = vmatpush1.bf16.msra.mxu0 %v88
  %300 = vmatprep.subr.bf16.mxu0 0
  %301 = vmatpush2.bf16.msra.mxu0 0
  %302 = vmatprep.subr.bf16.mxu0 0
  %303 = vmatpush2.bf16.msra.mxu0 0
  %304 = vmatprep.subr.bf16.mxu0 0
  %305 = vmatpush2.bf16.msra.mxu0 0
  %306 = vmatprep.subr.bf16.mxu0 0
  %307 = vmatpush2.bf16.msra.mxu0 0
  %308 = vmatprep.subr.bf16.mxu0 0
  %309 = vmatpush2.bf16.msra.mxu0 0
  %310 = vmatprep.subr.bf16.mxu0 0
  %311 = vmatpush2.bf16.msra.mxu0 0
  %312 = vmatprep.subr.bf16.mxu0 0
  %313 = vmatpush2.bf16.msra.mxu0 0
  %314 = vmatprep.subr.bf16.mxu0 0
  %315 = vmatpush2.bf16.msra.mxu0 0
  %316 = vmatprep.mubr.bf16.mxu0 0
  %317 = vmatmul.mubr.bf16.gmra.mxu0 %v280
  %v318 = vpop.f32.mrf.mxu0
  %v319 = vadd.f32 %v283, %v318
  %v320 = vpop.f32.mrf.mxu0
  %v321 = vpop.f32.mrf.mxu0
  %v322 = vpop.f32.mrf.mxu0
  %323 = vdwg.mxu0
  %v324 = vtanh.pop %v319
  %v325 = vpack.c.bf16 %v324, %v324
  %s326 = scalar_lea.vmem %s0, 20
  %v327 = vld [vmem:[%s326] sm:$0xf]
  %v328 = vunpack.c.l.bf16 %v327
  %329 = vmatprep.subr.bf16.mxu0 0
  %330 = vmatpush1.bf16.msra.mxu0 %v95
  %331 = vmatprep.subr.bf16.mxu0 0
  %332 = vmatpush1.bf16.msra.mxu0 %v94
  %333 = vmatprep.subr.bf16.mxu0 0
  %334 = vmatpush1.bf16.msra.mxu0 %v93
  %335 = vmatprep.subr.bf16.mxu0 0
  %336 = vmatpush1.bf16.msra.mxu0 %v92
  %337 = vmatprep.subr.bf16.mxu0 0
  %338 = vmatpush1.bf16.msra.mxu0 %v91
  %339 = vmatprep.subr.bf16.mxu0 0
  %340 = vmatpush1.bf16.msra.mxu0 %v90
  %341 = vmatprep.subr.bf16.mxu0 0
  %342 = vmatpush1.bf16.msra.mxu0 %v89
  %343 = vmatprep.subr.bf16.mxu0 0
  %344 = vmatpush1.bf16.msra.mxu0 %v88
  %345 = vmatprep.subr.bf16.mxu0 0
  %346 = vmatpush2.bf16.msra.mxu0 0
  %347 = vmatprep.subr.bf16.mxu0 0
  %348 = vmatpush2.bf16.msra.mxu0 0
  %349 = vmatprep.subr.bf16.mxu0 0
  %350 = vmatpush2.bf16.msra.mxu0 0
  %351 = vmatprep.subr.bf16.mxu0 0
  %352 = vmatpush2.bf16.msra.mxu0 0
  %353 = vmatprep.subr.bf16.mxu0 0
  %354 = vmatpush2.bf16.msra.mxu0 0
  %355 = vmatprep.subr.bf16.mxu0 0
  %356 = vmatpush2.bf16.msra.mxu0 0
  %357 = vmatprep.subr.bf16.mxu0 0
  %358 = vmatpush2.bf16.msra.mxu0 0
  %359 = vmatprep.subr.bf16.mxu0 0
  %360 = vmatpush2.bf16.msra.mxu0 0
  %361 = vmatprep.mubr.bf16.mxu0 0
  %362 = vmatmul.mubr.bf16.gmra.mxu0 %v325
  %v363 = vpop.f32.mrf.mxu0
  %v364 = vadd.f32 %v328, %v363
  %v365 = vpop.f32.mrf.mxu0
  %v366 = vpop.f32.mrf.mxu0
  %v367 = vpop.f32.mrf.mxu0
  %368 = vdwg.mxu0
  %v369 = vtanh.pop %v364
  %v370 = vpack.c.bf16 %v369, %v369
  %s371 = scalar_lea.vmem %s0, 24
  %v372 = vld [vmem:[%s371] sm:$0xf]
  %v373 = vunpack.c.l.bf16 %v372
  %374 = vmatprep.subr.bf16.mxu0 0
  %375 = vmatpush1.bf16.msra.mxu0 %v95
  %376 = vmatprep.subr.bf16.mxu0 0
  %377 = vmatpush1.bf16.msra.mxu0 %v94
  %378 = vmatprep.subr.bf16.mxu0 0
  %379 = vmatpush1.bf16.msra.mxu0 %v93
  %380 = vmatprep.subr.bf16.mxu0 0
  %381 = vmatpush1.bf16.msra.mxu0 %v92
  %382 = vmatprep.subr.bf16.mxu0 0
  %383 = vmatpush1.bf16.msra.mxu0 %v91
  %384 = vmatprep.subr.bf16.mxu0 0
  %385 = vmatpush1.bf16.msra.mxu0 %v90
  %386 = vmatprep.subr.bf16.mxu0 0
  %387 = vmatpush1.bf16.msra.mxu0 %v89
  %388 = vmatprep.subr.bf16.mxu0 0
  %389 = vmatpush1.bf16.msra.mxu0 %v88
  %390 = vmatprep.subr.bf16.mxu0 0
  %391 = vmatpush2.bf16.msra.mxu0 0
  %392 = vmatprep.subr.bf16.mxu0 0
  %393 = vmatpush2.bf16.msra.mxu0 0
  %394 = vmatprep.subr.bf16.mxu0 0
  %395 = vmatpush2.bf16.msra.mxu0 0
  %396 = vmatprep.subr.bf16.mxu0 0
  %397 = vmatpush2.bf16.msra.mxu0 0
  %398 = vmatprep.subr.bf16.mxu0 0
  %399 = vmatpush2.bf16.msra.mxu0 0
  %400 = vmatprep.subr.bf16.mxu0 0
  %401 = vmatpush2.bf16.msra.mxu0 0
  %402 = vmatprep.subr.bf16.mxu0 0
  %403 = vmatpush2.bf16.msra.mxu0 0
  %404 = vmatprep.subr.bf16.mxu0 0
  %405 = vmatpush2.bf16.msra.mxu0 0
  %406 = vmatprep.mubr.bf16.mxu0 0
  %407 = vmatmul.mubr.bf16.gmra.mxu0 %v370
  %v408 = vpop.f32.mrf.mxu0
  %v409 = vadd.f32 %v373, %v408
  %v410 = vpop.f32.mrf.mxu0
  %v411 = vpop.f32.mrf.mxu0
  %v412 = vpop.f32.mrf.mxu0
  %413 = vdwg.mxu0
  %v414 = vtanh.pop %v409
  %v415 = vpack.c.bf16 %v414, %v414
  %s416 = scalar_lea.vmem %s0, 28
  %v417 = vld [vmem:[%s416] sm:$0xf]
  %v418 = vunpack.c.l.bf16 %v417
  %419 = vmatprep.subr.bf16.mxu0 0
  %420 = vmatpush1.bf16.msra.mxu0 %v95
  %421 = vmatprep.subr.bf16.mxu0 0
  %422 = vmatpush1.bf16.msra.mxu0 %v94
  %423 = vmatprep.subr.bf16.mxu0 0
  %424 = vmatpush1.bf16.msra.mxu0 %v93
  %425 = vmatprep.subr.bf16.mxu0 0
  %426 = vmatpush1.bf16.msra.mxu0 %v92
  %427 = vmatprep.subr.bf16.mxu0 0
  %428 = vmatpush1.bf16.msra.mxu0 %v91
  %429 = vmatprep.subr.bf16.mxu0 0
  %430 = vmatpush1.bf16.msra.mxu0 %v90
  %431 = vmatprep.subr.bf16.mxu0 0
  %432 = vmatpush1.bf16.msra.mxu0 %v89
  %433 = vmatprep.subr.bf16.mxu0 0
  %434 = vmatpush1.bf16.msra.mxu0 %v88
  %435 = vmatprep.subr.bf16.mxu0 0
  %436 = vmatpush2.bf16.msra.mxu0 0
  %437 = vmatprep.subr.bf16.mxu0 0
  %438 = vmatpush2.bf16.msra.mxu0 0
  %439 = vmatprep.subr.bf16.mxu0 0
  %440 = vmatpush2.bf16.msra.mxu0 0
  %441 = vmatprep.subr.bf16.mxu0 0
  %442 = vmatpush2.bf16.msra.mxu0 0
  %443 = vmatprep.subr.bf16.mxu0 0
  %444 = vmatpush2.bf16.msra.mxu0 0
  %445 = vmatprep.subr.bf16.mxu0 0
  %446 = vmatpush2.bf16.msra.mxu0 0
  %447 = vmatprep.subr.bf16.mxu0 0
  %448 = vmatpush2.bf16.msra.mxu0 0
  %449 = vmatprep.subr.bf16.mxu0 0
  %450 = vmatpush2.bf16.msra.mxu0 0
  %451 = vmatprep.mubr.bf16.mxu0 0
  %452 = vmatmul.mubr.bf16.gmra.mxu0 %v415
  %v453 = vpop.f32.mrf.mxu0
  %v454 = vadd.f32 %v418, %v453
  %v455 = vpop.f32.mrf.mxu0
  %v456 = vpop.f32.mrf.mxu0
  %v457 = vpop.f32.mrf.mxu0
  %458 = vdwg.mxu0
  %v459 = vtanh.pop %v454
  %v460 = vpack.c.bf16 %v459, %v459
  %461 = vst [vmem:[#allocation2] sm:$0xf] %v460
  // Predicated region
  $region38: #{rnn_model_forward.1} parent=0 // pred_check
    %p462 = pneg %p32
  $region39: #{rnn_model_forward.1} parent=0 // pred_check_branch
    %464 = sbr.rel (%p462) target = $region41
  $region40: #{rnn_model_forward.1} parent=0 // pred_region
    %v465 = vld [vmem:[#allocation2] sm:$0xf]
    %v466 = vld [vmem:[%s1] sm:$0xff]
    %v467 = vtanh.pop %v466
    %v468 = vld [vmem:[%s3] sm:$0xf]
    %v469 = vld [vmem:[%s3 + $0x4] sm:$0xf]
    %v470 = vld [vmem:[%s3 + $0x8] sm:$0xf]
    %v471 = vld [vmem:[%s3 + $0xc] sm:$0xf]
    %v472 = vld [vmem:[%s3 + $0x10] sm:$0xf]
    %v473 = vld [vmem:[%s3 + $0x14] sm:$0xf]
    %v474 = vld [vmem:[%s3 + $0x18] sm:$0xf]
    %v475 = vld [vmem:[%s3 + $0x1c] sm:$0xf]
    %v476 = vld [vmem:[%s3 + $0x20] sm:$0xf]
    %v477 = vld [vmem:[%s3 + $0x24] sm:$0xf]
    %v478 = vld [vmem:[%s3 + $0x28] sm:$0xf]
    %v479 = vld [vmem:[%s3 + $0x2c] sm:$0xf]
    %v480 = vld [vmem:[%s3 + $0x30] sm:$0xf]
    %v481 = vld [vmem:[%s3 + $0x34] sm:$0xf]
    %v482 = vld [vmem:[%s3 + $0x38] sm:$0xf]
    %v483 = vld [vmem:[%s3 + $0x3c] sm:$0xf]
    %v484 = vpack.c.bf16 %v467, %v467
    %v485 = vld [vmem:[%s4] sm:$0xf]
    %v486 = vld [vmem:[%s4 + $0x4] sm:$0xf]
    %v487 = vld [vmem:[%s4 + $0x8] sm:$0xf]
    %v488 = vld [vmem:[%s4 + $0xc] sm:$0xf]
    %v489 = vld [vmem:[%s4 + $0x10] sm:$0xf]
    %v490 = vld [vmem:[%s4 + $0x14] sm:$0xf]
    %v491 = vld [vmem:[%s4 + $0x18] sm:$0xf]
    %v492 = vld [vmem:[%s4 + $0x1c] sm:$0xf]
    %v493 = vld [vmem:[%s4 + $0x20] sm:$0xf]
    %v494 = vld [vmem:[%s4 + $0x24] sm:$0xf]
    %v495 = vld [vmem:[%s4 + $0x28] sm:$0xf]
    %v496 = vld [vmem:[%s4 + $0x2c] sm:$0xf]
    %v497 = vld [vmem:[%s4 + $0x30] sm:$0xf]
    %v498 = vld [vmem:[%s4 + $0x34] sm:$0xf]
    %v499 = vld [vmem:[%s4 + $0x38] sm:$0xf]
    %v500 = vld [vmem:[%s4 + $0x3c] sm:$0xf]
    %v517 = vunpack.c.l.b16 %v485
    %v518 = vunpack.c.l.b16 %v486
    %v519 = vunpack.c.l.b16 %v487
    %v520 = vunpack.c.l.b16 %v488
    %v521 = vunpack.c.l.b16 %v489
    %v522 = vunpack.c.l.b16 %v490
    %v523 = vunpack.c.l.b16 %v491
    %v524 = vunpack.c.l.b16 %v492
    %v525 = vunpack.c.l.b16 %v493
    %v526 = vunpack.c.l.b16 %v494
    %v527 = vunpack.c.l.b16 %v495
    %v528 = vunpack.c.l.b16 %v496
    %v529 = vunpack.c.l.b16 %v497
    %v530 = vunpack.c.l.b16 %v498
    %v531 = vunpack.c.l.b16 %v499
    %v532 = vunpack.c.l.b16 %v500
    %v533 = vpack.c.b16 %v518, %v517
    %v534 = vpack.c.b16 %v520, %v519
    %v535 = vpack.c.b16 %v522, %v521
    %v536 = vpack.c.b16 %v524, %v523
    %v537 = vpack.c.b16 %v526, %v525
    %v538 = vpack.c.b16 %v528, %v527
    %v539 = vpack.c.b16 %v530, %v529
    %v540 = vpack.c.b16 %v532, %v531
    %549 = vmatprep.subr.bf16.mxu0 0
    %550 = vmatpush1.bf16.msra.mxu0 %v540
    %551 = vmatprep.subr.bf16.mxu0 0
    %552 = vmatpush1.bf16.msra.mxu0 %v539
    %553 = vmatprep.subr.bf16.mxu0 0
    %554 = vmatpush1.bf16.msra.mxu0 %v538
    %555 = vmatprep.subr.bf16.mxu0 0
    %556 = vmatpush1.bf16.msra.mxu0 %v537
    %557 = vmatprep.subr.bf16.mxu0 0
    %558 = vmatpush1.bf16.msra.mxu0 %v536
    %559 = vmatprep.subr.bf16.mxu0 0
    %560 = vmatpush1.bf16.msra.mxu0 %v535
    %561 = vmatprep.subr.bf16.mxu0 0
    %562 = vmatpush1.bf16.msra.mxu0 %v534
    %563 = vmatprep.subr.bf16.mxu0 0
    %564 = vmatpush1.bf16.msra.mxu0 %v533
    %565 = vmatprep.subr.bf16.mxu0 0
    %566 = vmatpush2.bf16.msra.mxu0 0
    %567 = vmatprep.subr.bf16.mxu0 0
    %568 = vmatpush2.bf16.msra.mxu0 0
    %569 = vmatprep.subr.bf16.mxu0 0
    %570 = vmatpush2.bf16.msra.mxu0 0
    %571 = vmatprep.subr.bf16.mxu0 0
    %572 = vmatpush2.bf16.msra.mxu0 0
    %573 = vmatprep.subr.bf16.mxu0 0
    %574 = vmatpush2.bf16.msra.mxu0 0
    %575 = vmatprep.subr.bf16.mxu0 0
    %576 = vmatpush2.bf16.msra.mxu0 0
    %577 = vmatprep.subr.bf16.mxu0 0
    %578 = vmatpush2.bf16.msra.mxu0 0
    %579 = vmatprep.subr.bf16.mxu0 0
    %580 = vmatpush2.bf16.msra.mxu0 0
    %581 = vmatprep.mubr.bf16.mxu0 0
    %582 = vmatmul.mubr.bf16.gmra.mxu0 %v484
    %v583 = vpop.f32.mrf.mxu0
    %v584 = vadd.f32 0.0, %v583
    %v585 = vpop.f32.mrf.mxu0
    %v586 = vpop.f32.mrf.mxu0
    %v587 = vpop.f32.mrf.mxu0
    %588 = vdwg.mxu0
    %v605 = vunpack.c.l.b16 %v468
    %v606 = vunpack.c.l.b16 %v469
    %v607 = vunpack.c.l.b16 %v470
    %v608 = vunpack.c.l.b16 %v471
    %v609 = vunpack.c.l.b16 %v472
    %v610 = vunpack.c.l.b16 %v473
    %v611 = vunpack.c.l.b16 %v474
    %v612 = vunpack.c.l.b16 %v475
    %v613 = vunpack.c.l.b16 %v476
    %v614 = vunpack.c.l.b16 %v477
    %v615 = vunpack.c.l.b16 %v478
    %v616 = vunpack.c.l.b16 %v479
    %v617 = vunpack.c.l.b16 %v480
    %v618 = vunpack.c.l.b16 %v481
    %v619 = vunpack.c.l.b16 %v482
    %v620 = vunpack.c.l.b16 %v483
    %v621 = vpack.c.b16 %v606, %v605
    %v622 = vpack.c.b16 %v608, %v607
    %v623 = vpack.c.b16 %v610, %v609
    %v624 = vpack.c.b16 %v612, %v611
    %v625 = vpack.c.b16 %v614, %v613
    %v626 = vpack.c.b16 %v616, %v615
    %v627 = vpack.c.b16 %v618, %v617
    %v628 = vpack.c.b16 %v620, %v619
    %637 = vmatprep.subr.bf16.mxu0 0
    %638 = vmatpush1.bf16.msra.mxu0 %v628
    %639 = vmatprep.subr.bf16.mxu0 0
    %640 = vmatpush1.bf16.msra.mxu0 %v627
    %641 = vmatprep.subr.bf16.mxu0 0
    %642 = vmatpush1.bf16.msra.mxu0 %v626
    %643 = vmatprep.subr.bf16.mxu0 0
    %644 = vmatpush1.bf16.msra.mxu0 %v625
    %645 = vmatprep.subr.bf16.mxu0 0
    %646 = vmatpush1.bf16.msra.mxu0 %v624
    %647 = vmatprep.subr.bf16.mxu0 0
    %648 = vmatpush1.bf16.msra.mxu0 %v623
    %649 = vmatprep.subr.bf16.mxu0 0
    %650 = vmatpush1.bf16.msra.mxu0 %v622
    %651 = vmatprep.subr.bf16.mxu0 0
    %652 = vmatpush1.bf16.msra.mxu0 %v621
    %653 = vmatprep.subr.bf16.mxu0 0
    %654 = vmatpush2.bf16.msra.mxu0 0
    %655 = vmatprep.subr.bf16.mxu0 0
    %656 = vmatpush2.bf16.msra.mxu0 0
    %657 = vmatprep.subr.bf16.mxu0 0
    %658 = vmatpush2.bf16.msra.mxu0 0
    %659 = vmatprep.subr.bf16.mxu0 0
    %660 = vmatpush2.bf16.msra.mxu0 0
    %661 = vmatprep.subr.bf16.mxu0 0
    %662 = vmatpush2.bf16.msra.mxu0 0
    %663 = vmatprep.subr.bf16.mxu0 0
    %664 = vmatpush2.bf16.msra.mxu0 0
    %665 = vmatprep.subr.bf16.mxu0 0
    %666 = vmatpush2.bf16.msra.mxu0 0
    %667 = vmatprep.subr.bf16.mxu0 0
    %668 = vmatpush2.bf16.msra.mxu0 0
    %669 = vmatprep.mubr.bf16.mxu0 0
    %670 = vmatmul.mubr.bf16.gmra.mxu0 %v465
    %v671 = vpop.f32.mrf.mxu0
    %v672 = vadd.f32 %v584, %v671
    %v673 = vpop.f32.mrf.mxu0
    %v674 = vpop.f32.mrf.mxu0
    %v675 = vpop.f32.mrf.mxu0
    %676 = vdwg.mxu0
    %v677 = vld [vmem:[%s5] sm:$0x1]
    %v679 = vlaneseq
    %v680 = vshrl.u32 %v679, 7
    %v681 = vsub.s32 0, %v680
    %v682 = vrot.slane %v677, %v681
    %v684 = vadd.f32 %v672, %v682
    %v685 = vmax.f32 %v684, 0.0
    %v686 = vld [vmem:[%s6] sm:$0x1]
    %v688 = vlaneseq
    %v689 = vshrl.u32 %v688, 7
    %v690 = vsub.s32 0, %v689
    %v691 = vrot.slane %v686, %v690
    %v693 = vmul.f32 %v685, %v691
    %vm694 = vcmask 523264
    %v695 = vsel %vm694, %v693, 0.0
    %696 = vadd.xlane.f32.xlu0 %v695
    %v697 = vpop.xlane.xlu0 %696
    %v698 = vld [vmem:[#allocation3] sm:$0x1]
    %v700 = vlaneseq
    %v701 = vshrl.u32 %v700, 7
    %v702 = vsub.s32 0, %v701
    %v703 = vrot.slane %v698, %v702
    %v705 = vadd.f32 %v697, %v703
    %v706 = vxor.u32 %v705, 2147483648
    %v707 = vmul.f32 %v706, 1.442695
    %v708 = vpow.pop %v707
    %v709 = vadd.f32 %v708, 1.0
    %v710 = vrcp.pop %v709
    %v711 = vmul.f32 1.0, %v710
    %vm712 = vcmask 7168
    %713 = vst.msk [vmem:[%s8] sm:$0xff] %vm712, %v711
  $region41: #{rnn_model_forward.1} parent=0 // pred_fallthru
    _
  // Predicated region
  $region42: #{rnn_model_forward.1} parent=0 // pred_check
    _
  $region43: #{rnn_model_forward.1} parent=0 // pred_check_branch
    %715 = sbr.rel (0) target = $region45
  $region44: #{rnn_model_forward.1} parent=0 // pred_region
    _
  $region45: #{rnn_model_forward.1} parent=0 // pred_fallthru
    _
  // Predicated region
  $region46: #{rnn_model_forward.1} parent=0 // pred_check
    _
  $region47: #{rnn_model_forward.1} parent=0 // pred_check_branch
    %717 = sbr.rel (0) target = $region49
  $region48: #{rnn_model_forward.1} parent=0 // pred_region
    _
  $region49: #{rnn_model_forward.1} parent=0 // pred_fallthru
    _

</llo_original>
